<compile_context>
chip_gen: v7x
topology: tpu7x:2x2x1
jax: 0.10.0
libtpu: 0.0.40
codegen_flags: <defaults>
</compile_context>

<pallas_src>
import functools

import jax
import jax.numpy as jnp
from jax import lax
from jax.experimental import pallas as pl
from jax.experimental.pallas import tpu as pltpu

_COMPUTE_DTYPE = jnp.bfloat16


def _pick_tile(total, preferred):
    """Largest candidate that divides `total`, else the full extent."""
    for t in preferred:
        if t <= total and total % t == 0:
            return t
    return total


def _vmem_limit_bytes():
    """Generation-aware scoped-VMEM budget: 3/4 of physical, >=24 MiB headroom."""
    try:
        cap = int(pltpu.get_tpu_info().vmem_capacity_bytes)
    except Exception:
        cap = 64 * 1024 * 1024          # conservative: v7x per-TensorCore VMEM
    return max(32 * 1024 * 1024, min(cap * 3 // 4, cap - 24 * 1024 * 1024))


def _qk_tile_cap():
    """q/kv tile cap: 256 on the 2x256^2 MXUs (v6e / v7x), 128 otherwise (v5e)."""
    try:
        kind = jax.devices()[0].device_kind.lower()
    except Exception:
        return 128
    return 256 if ("v6" in kind or "v7" in kind or "7x" in kind) else 128


def _buffered_spec(shape, index_map, depth):
    """BlockSpec with deeper multi-buffering when this jax build supports it."""
    try:
        return pl.BlockSpec(shape, index_map, pipeline_mode=pl.Buffered(depth))
    except Exception:
        return pl.BlockSpec(shape, index_map)


# ---------------------------------------------------------------------------
# Kernel 1: fused QKV projection.
#   x2:(tm, dim) @ [Wq*scale | Wk | Wv]:(dim, 3*dim)  ->  q/k/v (tm, dim) each,
#   stored head-concatenated and lane-dense.  The weight block is resident.
# ---------------------------------------------------------------------------
def _qkv_proj_kernel(x_ref, w_ref, q_ref, k_ref, v_ref, *, dim):
    x = x_ref[...]                                                    # (tm, dim) bf16
    qkv = jnp.dot(x, w_ref[...], preferred_element_type=jnp.float32)  # (tm, 3*dim) f32
    q_ref[...] = qkv[:, :dim].astype(q_ref.dtype)      # scale already folded into Wq
    k_ref[...] = qkv[:, dim:2 * dim].astype(k_ref.dtype)
    v_ref[...] = qkv[:, 2 * dim:].astype(v_ref.dtype)


# ---------------------------------------------------------------------------
# Kernel 2: flash-style attention (online softmax over the innermost KV axis)
# with the output projection + bias fused into the finalize step.
# One (batch, q-tile) per outer grid cell; all heads handled inside the kernel
# via static lane slices so HBM blocks stay lane-dense.
# ---------------------------------------------------------------------------
def _flash_attn_out_kernel(q_ref, k_ref, v_ref, wo_ref, b_ref, o_ref,
                           m_sc, l_sc, acc_sc, *, heads, d):
    ki = pl.program_id(2)

    @pl.when(ki == 0)
    def _init():
        m_sc[...] = jnp.full(m_sc.shape, -jnp.inf, dtype=jnp.float32)
        l_sc[...] = jnp.zeros(l_sc.shape, dtype=jnp.float32)
        acc_sc[...] = jnp.zeros(acc_sc.shape, dtype=jnp.float32)

    for h in range(heads):                       # static unroll over heads
        q_h = q_ref[:, h * d:(h + 1) * d]        # (tq, d) bf16, pre-scaled
        k_h = k_ref[:, h * d:(h + 1) * d]        # (tk, d) bf16
        v_h = v_ref[:, h * d:(h + 1) * d]        # (tk, d) bf16

        # scores (tq, tk): bf16 operands, f32 accumulation on the MXU.
        s = lax.dot_general(q_h, k_h, (((1,), (1,)), ((), ())),
                            preferred_element_type=jnp.float32)

        m_prev = m_sc[h]                         # (tq, 1) f32
        m_new = jnp.maximum(m_prev, jnp.max(s, axis=-1, keepdims=True))
        alpha = jnp.exp(m_prev - m_new)          # f32 softmax math (v5e-safe)
        p = jnp.exp(s - m_new)
        l_sc[h] = alpha * l_sc[h] + jnp.sum(p, axis=-1, keepdims=True)
        acc_sc[h] = alpha * acc_sc[h] + jnp.dot(p.astype(v_h.dtype), v_h,
                                                preferred_element_type=jnp.float32)
        m_sc[h] = m_new
        # TODO(synk): optional `mask` / `maps` pre-softmax masking not implemented
        # (both are None in this call path); guard -inf tiles before adding it.

    @pl.when(ki == pl.num_programs(2) - 1)
    def _finalize():
        parts = []
        for h in range(heads):
            inv_l = pl.reciprocal(l_sc[h], approx=True)    # EUP slot, not a VALU divide
            parts.append((acc_sc[h] * inv_l).astype(_COMPUTE_DTYPE))
        ctx = jnp.concatenate(parts, axis=-1)              # (tq, dim) head-concat bf16
        out = jnp.dot(ctx, wo_ref[...], preferred_element_type=jnp.float32)
        o_ref[...] = (out + b_ref[...]).astype(o_ref.dtype)
        # TODO(synk): dropout after the projection is eval-mode identity here.


def attention_forward(x, w_qkv, w_out, b_out, heads):
    """softmax((xWq)(xWk)^T * dim**-0.5) (xWv) Wo + b, per batch element."""
    b, n, dim = x.shape
    assert dim % heads == 0, "dim must be divisible by heads"
    assert n % 8 == 0 or b == 1, "sequence length must be a multiple of 8 when batch > 1"
    d = dim // heads
    rows = b * n
    # NOTE: matches the module: scale uses the full model dim, not head_dim.
    scale = float(dim) ** (-0.5)

    vmem_limit = _vmem_limit_bytes()
    qk_cap = _qk_tile_cap()

    # ---- wrapper-side layout plumbing (one-time; no compute hoisting) ----
    x2 = x.reshape(rows, dim).astype(_COMPUTE_DTYPE)
    # Fused projection weight: [Wq * scale | Wk | Wv]; softmax scale folded into Wq.
    w_fused = jnp.concatenate(
        [w_qkv[:, :dim] * scale, w_qkv[:, dim:2 * dim], w_qkv[:, 2 * dim:]],
        axis=1).astype(_COMPUTE_DTYPE)                       # (dim, 3*dim)
    wo = w_out.astype(_COMPUTE_DTYPE)                        # (dim, dim), resident
    bias = b_out.reshape(1, dim).astype(jnp.float32)

    # ---- tile sizes (multiples of 8 / full extents) ----
    tm = _pick_tile(rows, (1024, 512, 256, 128, 64, 32, 16, 8))   # projection rows
    tq = _pick_tile(n, (qk_cap, 128, 64, 32, 16, 8))              # flash q tile
    tk = _pick_tile(n, (qk_cap, 128, 64, 32, 16, 8))              # flash kv tile

    # ---- 1) fused QKV projection; weight resident, outputs lane-dense ----
    q2, k2, v2 = pl.pallas_call(
        functools.partial(_qkv_proj_kernel, dim=dim),
        out_shape=(
            jax.ShapeDtypeStruct((rows, dim), _COMPUTE_DTYPE),
            jax.ShapeDtypeStruct((rows, dim), _COMPUTE_DTYPE),
            jax.ShapeDtypeStruct((rows, dim), _COMPUTE_DTYPE),
        ),
        grid_spec=pltpu.PrefetchScalarGridSpec(
            num_scalar_prefetch=0,
            grid=(rows // tm,),
            in_specs=[
                pl.BlockSpec((tm, dim), lambda i: (i, 0)),
                pl.BlockSpec((dim, 3 * dim), lambda i: (0, 0)),   # fetched once
            ],
            out_specs=[
                pl.BlockSpec((tm, dim), lambda i: (i, 0)),
                pl.BlockSpec((tm, dim), lambda i: (i, 0)),
                pl.BlockSpec((tm, dim), lambda i: (i, 0)),
            ],
        ),
        compiler_params=pltpu.CompilerParams(
            dimension_semantics=("parallel",),
            vmem_limit_bytes=vmem_limit),
    )(x2, w_fused)

    # ---- 2) flash attention + fused output projection ----
    nq, nk = n // tq, n // tk

    def _q_map(bi, qi, ki):
        return (bi * nq + qi, 0)

    def _kv_map(bi, qi, ki):
        return (bi * nk + ki, 0)

    def _w_map(bi, qi, ki):
        return (0, 0)

    # NOTE(v7x): batch (>=2) and q-tile axes are "parallel" so both TensorCores
    # get work even when a single tile covers the whole sequence.
    out2 = pl.pallas_call(
        functools.partial(_flash_attn_out_kernel, heads=heads, d=d),
        out_shape=jax.ShapeDtypeStruct((rows, dim), x.dtype),
        grid_spec=pltpu.PrefetchScalarGridSpec(
            num_scalar_prefetch=0,
            grid=(b, nq, nk),
            in_specs=[
                pl.BlockSpec((tq, dim), _q_map),
                _buffered_spec((tk, dim), _kv_map, 3),   # small K stream: 3-deep pipeline
                _buffered_spec((tk, dim), _kv_map, 3),   # small V stream: 3-deep pipeline
                pl.BlockSpec((dim, dim), _w_map),        # W_out resident
                pl.BlockSpec((1, dim), _w_map),          # bias resident
            ],
            out_specs=pl.BlockSpec((tq, dim), _q_map),
            scratch_shapes=[
                pltpu.VMEM((heads, tq, 1), jnp.float32),   # running max per head
                pltpu.VMEM((heads, tq, 1), jnp.float32),   # running denom per head
                pltpu.VMEM((heads, tq, d), jnp.float32),   # output accumulator per head
            ],
        ),
        compiler_params=pltpu.CompilerParams(
            dimension_semantics=("parallel", "parallel", "arbitrary"),
            vmem_limit_bytes=vmem_limit),
    )(q2, k2, v2, wo, bias)

    return out2.reshape(b, n, dim)


def attention_ref(x, w_qkv, w_out, b_out, heads):
    # Pure-JAX f32 reference mirroring the PyTorch forward (mask=None, maps=None, eval dropout).
    b, n, dim = x.shape
    d = dim // heads
    scale = float(dim) ** (-0.5)
    qkv = x @ w_qkv
    q, k, v = jnp.split(qkv, 3, axis=-1)
    split_heads = lambda t: t.reshape(b, n, heads, d).transpose(0, 2, 1, 3)
    q, k, v = map(split_heads, (q, k, v))
    dots = jnp.einsum('bhid,bhjd->bhij', q, k) * scale
    attn = jax.nn.softmax(dots, axis=-1)
    out = jnp.einsum('bhij,bhjd->bhid', attn, v)
    out = out.transpose(0, 2, 1, 3).reshape(b, n, dim)
    return out @ w_out + b_out


if __name__ == "__main__":
    # Small shapes consistent with the module: batch=2, seq=8, dim=32, heads=4.
    b, n, dim, heads = 2, 8, 32, 4

    key = jax.random.PRNGKey(0)
    kx, kq, ko, kb = jax.random.split(key, 4)

    x = jax.random.normal(kx, (b, n, dim), dtype=jnp.float32)
    # Deterministic synthetic weights (module __init__ defines shapes; no checkpoint load).
    # Stored pre-transposed: y = x @ W (+ bias), equivalent to nn.Linear with W^T.
    w_qkv = 0.02 * jax.random.normal(kq, (dim, 3 * dim), dtype=jnp.float32)
    w_out = 0.02 * jax.random.normal(ko, (dim, dim), dtype=jnp.float32)
    b_out = 0.02 * jax.random.normal(kb, (1, dim), dtype=jnp.float32)

    out = attention_forward(x, w_qkv, w_out, b_out, heads)
    out = jax.block_until_ready(out)

    ref = attention_ref(x, w_qkv, w_out, b_out, heads)
    assert out.shape == (b, n, dim)
    # bf16 MXU operands (f32 accumulation) -> compare at bf16-level tolerance vs f32 reference.
    assert jnp.allclose(out, ref, atol=2e-2, rtol=2e-2), "Pallas kernel mismatch vs reference"
    print("KERNEL_OK")
</pallas_src>

<mosaic_0001>
module attributes {stable_mosaic.version = 11 : i64} {
  func.func @_qkv_proj_kernel(%arg0: i32, %arg1: memref<16x32xbf16, #tpu.memory_space<vmem>>, %arg2: memref<32x96xbf16, #tpu.memory_space<vmem>>, %arg3: memref<16x32xbf16, #tpu.memory_space<vmem>>, %arg4: memref<16x32xbf16, #tpu.memory_space<vmem>>, %arg5: memref<16x32xbf16, #tpu.memory_space<vmem>>) attributes {dimension_semantics = [#tpu.dimension_semantics<parallel>], iteration_bounds = array<i64: 1>, scalar_prefetch = 0 : i64, scratch_operands = 0 : i64, tpu.core_type = #tpu.core_type<tc>, window_params = [{transform_indices = @transform_0, window_bounds = array<i64: 16, 32>}, {pipeline_mode = #tpu.pipeline_mode<synchronous>, transform_indices = @transform_1, window_bounds = array<i64: 32, 96>}, {transform_indices = @transform_2, window_bounds = array<i64: 16, 32>}, {transform_indices = @transform_3, window_bounds = array<i64: 16, 32>}, {transform_indices = @transform_4, window_bounds = array<i64: 16, 32>}]} {
    %c0 = arith.constant 0 : index
    %c0_0 = arith.constant 0 : index
    %0 = vector.load %arg1[%c0, %c0_0] : memref<16x32xbf16, #tpu.memory_space<vmem>>, vector<16x32xbf16>
    %c0_1 = arith.constant 0 : index
    %c0_2 = arith.constant 0 : index
    %1 = vector.load %arg2[%c0_1, %c0_2] : memref<32x96xbf16, #tpu.memory_space<vmem>>, vector<32x96xbf16>
    %cst = arith.constant dense<0.000000e+00> : vector<16x96xf32>
    %2 = tpu.matmul %0, %1, %cst {dimension_numbers = #tpu.dot_dimension_numbers<[1], [0], [0], [1], [0, 0, 1, 1], [], []>} : vector<16x32xbf16>, vector<32x96xbf16>, vector<16x96xf32> -> vector<16x96xf32>
    %3 = vector.extract_strided_slice %2 {offsets = [0, 0], sizes = [16, 32], strides = [1, 1]} : vector<16x96xf32> to vector<16x32xf32>
    %4 = arith.truncf %3 : vector<16x32xf32> to vector<16x32xbf16>
    %c0_3 = arith.constant 0 : index
    %c0_4 = arith.constant 0 : index
    %5 = vector.load %arg3[%c0_3, %c0_4] : memref<16x32xbf16, #tpu.memory_space<vmem>>, vector<16x32xbf16>
    tpu.vector_store %arg3[%c0_3, %c0_4], %4 {strides = array<i32>} : memref<16x32xbf16, #tpu.memory_space<vmem>>, vector<16x32xbf16>,
    %6 = vector.extract_strided_slice %2 {offsets = [0, 32], sizes = [16, 32], strides = [1, 1]} : vector<16x96xf32> to vector<16x32xf32>
    %7 = arith.truncf %6 : vector<16x32xf32> to vector<16x32xbf16>
    %c0_5 = arith.constant 0 : index
    %c0_6 = arith.constant 0 : index
    %8 = vector.load %arg4[%c0_5, %c0_6] : memref<16x32xbf16, #tpu.memory_space<vmem>>, vector<16x32xbf16>
    tpu.vector_store %arg4[%c0_5, %c0_6], %7 {strides = array<i32>} : memref<16x32xbf16, #tpu.memory_space<vmem>>, vector<16x32xbf16>,
    %9 = vector.extract_strided_slice %2 {offsets = [0, 64], sizes = [16, 32], strides = [1, 1]} : vector<16x96xf32> to vector<16x32xf32>
    %10 = arith.truncf %9 : vector<16x32xf32> to vector<16x32xbf16>
    %c0_7 = arith.constant 0 : index
    %c0_8 = arith.constant 0 : index
    %11 = vector.load %arg5[%c0_7, %c0_8] : memref<16x32xbf16, #tpu.memory_space<vmem>>, vector<16x32xbf16>
    tpu.vector_store %arg5[%c0_7, %c0_8], %10 {strides = array<i32>} : memref<16x32xbf16, #tpu.memory_space<vmem>>, vector<16x32xbf16>,
    return
  }
  func.func @transform_0(%arg0: i32) -> (i32, i32) {
    %c0_i32 = arith.constant 0 : i32
    %c0_i32_0 = arith.constant 0 : i32
    return %arg0, %c0_i32 : i32, i32
  }
  func.func @transform_1(%arg0: i32) -> (i32, i32) {
    %c0_i32 = arith.constant 0 : i32
    %c0_i32_0 = arith.constant 0 : i32
    %c0_i32_1 = arith.constant 0 : i32
    return %c0_i32, %c0_i32_0 : i32, i32
  }
  func.func @transform_2(%arg0: i32) -> (i32, i32) {
    %c0_i32 = arith.constant 0 : i32
    %c0_i32_0 = arith.constant 0 : i32
    return %arg0, %c0_i32 : i32, i32
  }
  func.func @transform_3(%arg0: i32) -> (i32, i32) {
    %c0_i32 = arith.constant 0 : i32
    %c0_i32_0 = arith.constant 0 : i32
    return %arg0, %c0_i32 : i32, i32
  }
  func.func @transform_4(%arg0: i32) -> (i32, i32) {
    %c0_i32 = arith.constant 0 : i32
    %c0_i32_0 = arith.constant 0 : i32
    return %arg0, %c0_i32 : i32, i32
  }
}

</mosaic_0001>

<llo_original>
// kernel: tpu_custom_call.1
$region0: #{tpu_custom_call.1}
  #allocation0 [shape = 'u32[]', space=smem, size = 0x4, offset = 0x4, fixed_abs, tag = 'smem constant byte address 0x4 - core index']
  #allocation1 [shape = 'u32[144,128]{1,0:T(1,128)}', space=vmem, size = 0x12000, scoped, tag = 'internal scratch']
  %s0 = inlined_call_operand.hbm [shape: bf16[16,32], index: 0, kind: input, shape index: {}]
  %s1 = inlined_call_operand.hbm [shape: bf16[32,96], index: 1, kind: input, shape index: {}]
  %s2 = inlined_call_operand.hbm [shape: bf16[16,32], index: 2, kind: output, shape index: {0}]
  %s3 = inlined_call_operand.hbm [shape: bf16[16,32], index: 3, kind: output, shape index: {1}]
  %s4 = inlined_call_operand.hbm [shape: bf16[16,32], index: 4, kind: output, shape index: {2}]
  %5 = xla_tuple %s2, %s3, %s4
  %s6 = sld [smem:[#allocation0]]
  $region42: #{tpu_custom_call.1} parent=0
    _
  %s8 = ssub.s32 1, %s6
  %s9 = scalar_select 0, %s8, %s6
  $region1: #{tpu_custom_call.1} parent=0
    #allocation2 [shape = 'u8[4096]{0}', space=vmem, size = 0x1000, scoped, tag = 'input window, operand 0, single buffered']
    #allocation3 [shape = 's32[1]{0}', space=sflag, size = 0x4, scoped, tag = 'scoped memory for tpu_custom_call.1']
    #allocation4 [shape = 's32[1]{0}', space=sflag, size = 0x4, scoped, tag = 'scoped memory for tpu_custom_call.1']
    #allocation5 [shape = 'u8[8192]{0}', space=vmem, size = 0x2000, scoped, tag = 'input window, operand 1, single buffered']
    #allocation6 [shape = 's32[1]{0}', space=sflag, size = 0x4, scoped, tag = 'scoped memory for tpu_custom_call.1']
    #allocation7 [shape = 'u8[4096]{0}', space=vmem, size = 0x1000, scoped, tag = 'output window, operand 0, single buffered']
    #allocation8 [shape = 'u8[4096]{0}', space=vmem, size = 0x1000, scoped, tag = 'output window, operand 1, single buffered']
    #allocation9 [shape = 's32[1]{0}', space=sflag, size = 0x4, scoped, tag = 'scoped memory for tpu_custom_call.1']
    #allocation10 [shape = 'u8[4096]{0}', space=vmem, size = 0x1000, scoped, tag = 'output window, operand 2, single buffered']
    %10 = vsyncpa [#allocation3], 0
    %11 = vsyncpa [#allocation6], 0
    %12 = vsyncpa [#allocation4], 0
    %13 = vsyncpa [#allocation9], 0
    // Predicated region
    $region2: #{tpu_custom_call.1} parent=1 // pred_check
      _
    $region3: #{tpu_custom_call.1} parent=1 // pred_check_branch
      %15 = sbr.rel (0) target = $region5
    $region4: #{tpu_custom_call.1} parent=1 // pred_region
      %s17 = ssub.s32 128, 128
      %18 = vsyncadd [#allocation3], %s17
      %s19 = sshll.u32 [#allocation2], 4
      %s20 = int_to_ptr.vmem [resolvable:$true] %s19
      %25 = dma.hbm_to_vmem [thread:$0]  %s0, 128, %s20, [#allocation3], 64, 64, 4
    $region5: #{tpu_custom_call.1} parent=1 // pred_fallthru
      _
    // Predicated region
    $region6: #{tpu_custom_call.1} parent=1 // pred_check
      _
    $region7: #{tpu_custom_call.1} parent=1 // pred_check_branch
      %27 = sbr.rel (0) target = $region9
    $region8: #{tpu_custom_call.1} parent=1 // pred_region
      %s29 = ssub.s32 256, 256
      %30 = vsyncadd [#allocation6], %s29
      %s31 = sshll.u32 [#allocation5], 4
      %s32 = int_to_ptr.vmem [resolvable:$true] %s31
      %37 = dma.hbm_to_vmem [thread:$0]  %s1, 256, %s32, [#allocation6], 64, 64, 4
    $region9: #{tpu_custom_call.1} parent=1 // pred_fallthru
      _
    // Predicated region
    $region10: #{tpu_custom_call.1} parent=1 // pred_check
      _
    $region11: #{tpu_custom_call.1} parent=1 // pred_check_branch
      %39 = sbr.rel (0) target = $region13
    $region12: #{tpu_custom_call.1} parent=1 // pred_region
      %40 = dma.done [#allocation3], 128
    $region13: #{tpu_custom_call.1} parent=1 // pred_fallthru
      _
    // Predicated region
    $region14: #{tpu_custom_call.1} parent=1 // pred_check
      _
    $region15: #{tpu_custom_call.1} parent=1 // pred_check_branch
      %42 = sbr.rel (0) target = $region17
    $region16: #{tpu_custom_call.1} parent=1 // pred_region
      %43 = dma.done [#allocation6], 256
    $region17: #{tpu_custom_call.1} parent=1 // pred_fallthru
      _
    %v45 = vld [vmem:[#allocation2] sm:$0xf]
    %v46 = vld [vmem:[#allocation2 + $0x4] sm:$0xf]
    %v47 = vld [vmem:[#allocation5] sm:$0xf]
    %v48 = vld [vmem:[#allocation5 + $0x4] sm:$0xf]
    %v49 = vld [vmem:[#allocation5 + $0x8] sm:$0xf]
    %v50 = vld [vmem:[#allocation5 + $0xc] sm:$0xf]
    %v53 = vunpack.c.l.b16 %v45
    %v54 = vunpack.c.l.b16 %v46
    %v55 = vpack.c.b16 %v54, %v53
    %v60 = vunpack.c.l.b16 %v47
    %v61 = vunpack.c.l.b16 %v48
    %v62 = vunpack.c.l.b16 %v49
    %v63 = vunpack.c.l.b16 %v50
    %v64 = vpack.c.b16 %v61, %v60
    %v65 = vpack.c.b16 %v63, %v62
    %vm68 = vcmask 261120
    %v70 = vsel %vm68, %v55, 0
    %72 = vmatprep.subr.bf16.mxu0 0
    %73 = vmatpush1.bf16.msra.mxu0 %v64
    %74 = vmatprep.subr.bf16.mxu0 0
    %75 = vmatpush1.bf16.msra.mxu0 %v65
    %76 = vmatprep.subr.bf16.mxu0 0
    %77 = vmatpush1.bf16.msra.mxu0 0
    %78 = vmatprep.subr.bf16.mxu0 0
    %79 = vmatpush1.bf16.msra.mxu0 0
    %80 = vmatprep.subr.bf16.mxu0 0
    %81 = vmatpush1.bf16.msra.mxu0 0
    %82 = vmatprep.subr.bf16.mxu0 0
    %83 = vmatpush1.bf16.msra.mxu0 0
    %84 = vmatprep.subr.bf16.mxu0 0
    %85 = vmatpush1.bf16.msra.mxu0 0
    %86 = vmatprep.subr.bf16.mxu0 0
    %87 = vmatpush1.bf16.msra.mxu0 0
    %88 = vmatprep.subr.bf16.mxu0 0
    %89 = vmatpush1.bf16.msra.mxu0 0
    %90 = vmatprep.subr.bf16.mxu0 0
    %91 = vmatpush1.bf16.msra.mxu0 0
    %92 = vmatprep.subr.bf16.mxu0 0
    %93 = vmatpush1.bf16.msra.mxu0 0
    %94 = vmatprep.subr.bf16.mxu0 0
    %95 = vmatpush1.bf16.msra.mxu0 0
    %96 = vmatprep.subr.bf16.mxu0 0
    %97 = vmatpush1.bf16.msra.mxu0 0
    %98 = vmatprep.subr.bf16.mxu0 0
    %99 = vmatpush1.bf16.msra.mxu0 0
    %100 = vmatprep.subr.bf16.mxu0 0
    %101 = vmatpush1.bf16.msra.mxu0 0
    %102 = vmatprep.subr.bf16.mxu0 0
    %103 = vmatpush1.bf16.msra.mxu0 0
    %104 = vmatprep.mubr.bf16.mxu0 0
    %105 = vmatmul.mubr.bf16.gmra.mrb[0].mxu0 %v70
    %v106 = vpop.f32.mrb[0].mxu0
    %v107 = vadd.f32 0.0, %v106
    %v108 = vpop.f32.mrb[0].mxu0
    %v109 = vpop.f32.mrb[0].mxu0
    %v110 = vadd.f32 0.0, %v109
    %v111 = vpop.f32.mrb[0].mxu0
    %112 = vdwg.mxu0
    %v113 = vpack.c.bf16 %v110, %v107
    %v115 = vunpack.c.l.b16 %v113
    %v116 = vunpack.c.h.b16 %v113
    %v117 = vpack.c.b16 %v115, %v115
    %v118 = vpack.c.b16 %v116, %v116
    %vm121 = vcmask 257024
    %122 = vst.msk [vmem:[#allocation7] sm:$0xf] %vm121, %v117
    %123 = vst.msk [vmem:[#allocation7 + $0x4] sm:$0xf] %vm121, %v118
    %124 = vrot.lane.b32.xlu0 %v117, 96
    %v125 = vpop.permute.xlu0 %124
    %126 = vrot.lane.b32.xlu0 %v118, 96
    %v127 = vpop.permute.xlu0 %126
    %130 = vst.msk [vmem:[#allocation8] sm:$0xf] %vm121, %v125
    %131 = vst.msk [vmem:[#allocation8 + $0x4] sm:$0xf] %vm121, %v127
    %132 = vrot.lane.b32.xlu0 %v117, 64
    %v133 = vpop.permute.xlu0 %132
    %134 = vrot.lane.b32.xlu0 %v118, 64
    %v135 = vpop.permute.xlu0 %134
    %138 = vst.msk [vmem:[#allocation10] sm:$0xf] %vm121, %v133
    %139 = vst.msk [vmem:[#allocation10 + $0x4] sm:$0xf] %vm121, %v135
    // Predicated region
    $region18: #{tpu_custom_call.1} parent=1 // pred_check
      _
    $region19: #{tpu_custom_call.1} parent=1 // pred_check_branch
      %141 = sbr.rel (0) target = $region21
    $region20: #{tpu_custom_call.1} parent=1 // pred_region
      %s143 = ssub.s32 128, 128
      %144 = vsyncadd [#allocation4], %s143
      %s145 = sshll.u32 [#allocation7], 4
      %s146 = int_to_ptr.vmem [resolvable:$true] %s145
      %151 = dma.vmem_to_hbm [thread:$0]  %s146, 128, %s2, [#allocation4], 64, 64, 4
    $region21: #{tpu_custom_call.1} parent=1 // pred_fallthru
      _
    // Predicated region
    $region22: #{tpu_custom_call.1} parent=1 // pred_check
      _
    $region23: #{tpu_custom_call.1} parent=1 // pred_check_branch
      %153 = sbr.rel (0) target = $region25
    $region24: #{tpu_custom_call.1} parent=1 // pred_region
      %s155 = ssub.s32 128, 128
      %156 = vsyncadd [#allocation9], %s155
      %s157 = sshll.u32 [#allocation8], 4
      %s158 = int_to_ptr.vmem [resolvable:$true] %s157
      %163 = dma.vmem_to_hbm [thread:$0]  %s158, 128, %s3, [#allocation9], 64, 64, 4
    $region25: #{tpu_custom_call.1} parent=1 // pred_fallthru
      _
    // Predicated region
    $region26: #{tpu_custom_call.1} parent=1 // pred_check
      _
    $region27: #{tpu_custom_call.1} parent=1 // pred_check_branch
      %165 = sbr.rel (0) target = $region29
    $region28: #{tpu_custom_call.1} parent=1 // pred_region
      %s167 = ssub.s32 128, 128
      %168 = vsyncadd [#allocation9], %s167
      %s169 = sshll.u32 [#allocation10], 4
      %s170 = int_to_ptr.vmem [resolvable:$true] %s169
      %175 = dma.vmem_to_hbm [thread:$0]  %s170, 128, %s4, [#allocation9], 64, 64, 4
    $region29: #{tpu_custom_call.1} parent=1 // pred_fallthru
      _
    // Predicated region
    $region30: #{tpu_custom_call.1} parent=1 // pred_check
      _
    $region31: #{tpu_custom_call.1} parent=1 // pred_check_branch
      %177 = sbr.rel (0) target = $region33
    $region32: #{tpu_custom_call.1} parent=1 // pred_region
      %178 = dma.done [#allocation4], 128
    $region33: #{tpu_custom_call.1} parent=1 // pred_fallthru
      _
    // Predicated region
    $region34: #{tpu_custom_call.1} parent=1 // pred_check
      _
    $region35: #{tpu_custom_call.1} parent=1 // pred_check_branch
      %180 = sbr.rel (0) target = $region37
    $region36: #{tpu_custom_call.1} parent=1 // pred_region
      %181 = dma.done [#allocation9], 128
    $region37: #{tpu_custom_call.1} parent=1 // pred_fallthru
      _
    // Predicated region
    $region38: #{tpu_custom_call.1} parent=1 // pred_check
      _
    $region39: #{tpu_custom_call.1} parent=1 // pred_check_branch
      %183 = sbr.rel (0) target = $region41
    $region40: #{tpu_custom_call.1} parent=1 // pred_region
      %184 = dma.done [#allocation9], 128
    $region41: #{tpu_custom_call.1} parent=1 // pred_fallthru
      _
    %185 = vsyncpa [#allocation3], 1
    %186 = vsyncpa [#allocation6], 1
    %187 = vsyncpa [#allocation4], 1
    %188 = vsyncpa [#allocation9], 1

</llo_original>
